<compile_context>
chip_gen: v7x
topology: tpu7x:2x2x1
jax: 0.10.0
libtpu: 0.0.40
codegen_flags: <defaults>
</compile_context>

<pallas_src>
import functools

import jax
import jax.numpy as jnp
import numpy as np
from jax.experimental import pallas as pl
from jax.experimental.pallas import tpu as pltpu


def _pam_kernel(x_ref, xpw_ref, xph_ref, wq_ref, bq_ref, wk_ref, bk_ref,
                wv_ref, bv_ref, eh_ref, ew_ref, gamma_ref, o_ref, *, bc):
    c_full = x_ref.shape[1]

    # Full-C input (f32 resident in VMEM, fetched once per batch); bf16 view
    # feeds the MXU.
    x_bf = x_ref[0].astype(jnp.bfloat16)                       # (C, HW)

    # Value projection at full resolution: (BC, C) @ (C, HW) -> (BC, HW).
    v = jnp.dot(wv_ref[...], x_bf,
                preferred_element_type=jnp.float32) + bv_ref[...]

    # Query/key projections on the pre-pooled x (pooling commuted through the
    # 1x1 convs): tiny (BC, C) @ (C, H|W) matmuls.
    q_pool = (jnp.dot(wq_ref[...], xpw_ref[0],
                      preferred_element_type=jnp.float32) + bq_ref[...])   # (BC, H)
    k_pool = (jnp.dot(wk_ref[...], xph_ref[0],
                      preferred_element_type=jnp.float32) + bk_ref[...])   # (BC, W)

    # bf16 copies feed the one-hot broadcast matmuls (expander entries are 0/1,
    # so the broadcast itself is exact).
    qp_b = q_pool.astype(jnp.bfloat16)
    kp_b = k_pool.astype(jnp.bfloat16)
    qp_f = qp_b.astype(jnp.float32)
    kp_f = kp_b.astype(jnp.float32)

    # Row max of energy[c, h*W+w] = qp[c,h]*kp[c,w], computed exactly from the
    # per-row extrema -- avoids a (BC, HW) cross-lane max reduce.
    q_mx = jnp.max(qp_f, axis=-1, keepdims=True)
    q_mn = jnp.min(qp_f, axis=-1, keepdims=True)
    k_mx = jnp.max(kp_f, axis=-1, keepdims=True)
    k_mn = jnp.min(kp_f, axis=-1, keepdims=True)
    m = jnp.maximum(jnp.maximum(q_mx * k_mx, q_mx * k_mn),
                    jnp.maximum(q_mn * k_mx, q_mn * k_mn))      # (BC, 1)

    # Per-channel outer product broadcast to (BC, HW) via one-hot expanders
    # (MXU; produces the h-major / w-minor flattened lane layout directly).
    energy = (jnp.dot(qp_b, eh_ref[...], preferred_element_type=jnp.float32) *
              jnp.dot(kp_b, ew_ref[...], preferred_element_type=jnp.float32))

    # Fused softmax + gamma: attention is never materialized; gamma is folded
    # into the per-row scale so the store is (v*p)*scale + residual.
    p = jnp.exp(energy - m)                                     # (BC, HW)
    scale = gamma_ref[0] * pl.reciprocal(
        jnp.sum(p, axis=-1, keepdims=True), approx=True)        # (BC, 1)

    # Residual comes straight from the resident f32 x block (exact f32 add).
    if c_full == bc:
        res = x_ref[0]
    else:
        start = pl.multiple_of(pl.program_id(1) * bc, bc)
        res = x_ref[0, pl.ds(start, bc), :]

    o_ref[0] = (v * p) * scale + res


def _vmem_budget_bytes():
    """~85% of this generation's VMEM (64 MiB fallback, safe even on v7x)."""
    cap = None
    try:
        info = pltpu.get_tpu_info()
        cap = getattr(info, "vmem_capacity_bytes", None)
    except Exception:
        cap = None
    if not cap:
        cap = 64 * 2**20
    return int(0.85 * int(cap))


def _pick_channel_block(C, H, W, budget, min_blocks=1):
    """Largest channel block BC (divides C; 8-aligned when < C) whose live
    VMEM estimate fits `budget`; optionally forced to give >= min_blocks
    blocks so both v7x TensorCores have work when B is small."""
    HW = H * W

    def est(bc):
        return (2 * C * HW * 4        # full-C f32 x, double-buffered
                + C * HW * 2          # in-kernel bf16 cast of x
                + 2 * bc * HW * 4     # output block, double-buffered
                + 5 * bc * HW * 4     # live (bc, HW) f32 temps (v, energy, p, ...)
                + (H + W) * HW * 2    # bf16 one-hot expanders (single-buffered)
                + 12 * bc * C)        # Wq/Wk/Wv blocks (bf16, double-buffered)

    cands = sorted({d for d in range(8, C, 8) if C % d == 0} | {C}, reverse=True)
    for want_blocks in (min_blocks, 1):
        for bc in cands:
            if C // bc >= want_blocks and est(bc) <= budget:
                return bc
    # Nothing fits: fall back to the smallest aligned block.
    # TODO(synk): spatial (HW) tiling with an online softmax is needed for
    # very large H*W; not implemented here.
    return cands[-1]


def pam_module(x, params, *, kernel_narrow=1):
    """x: (B, C, H, W) float32 (NCHW, same as the PyTorch module)."""
    # TODO(synk): only kernel_narrow == 1 (the module default) is implemented;
    # general windowed avg-pool padding is not reproduced here.
    assert kernel_narrow == 1
    B, C, H, W = x.shape
    HW = H * W
    wq, bq, wk, bk, wv, bv, gamma = params

    x32 = x.astype(jnp.float32)
    x_flat = x32.reshape(B, C, HW)
    # Pooling commuted through the 1x1 convs: pool x once per batch here
    # (cheap wrapper glue); kernel only runs the value conv at full resolution.
    xpw = jnp.mean(x32, axis=3).astype(jnp.bfloat16)            # (B, C, H)
    xph = jnp.mean(x32, axis=2).astype(jnp.bfloat16)            # (B, C, W)

    budget = _vmem_budget_bytes()
    BC = _pick_channel_block(C, H, W, budget,
                             min_blocks=2 if B < 2 else 1)
    n_cblk = C // BC

    wq_bf = wq.astype(jnp.bfloat16)
    wk_bf = wk.astype(jnp.bfloat16)
    wv_bf = wv.astype(jnp.bfloat16)
    bq_c = bq.reshape(C, 1).astype(jnp.float32)
    bk_c = bk.reshape(C, 1).astype(jnp.float32)
    bv_c = bv.reshape(C, 1).astype(jnp.float32)
    gamma_s = gamma.reshape(1).astype(jnp.float32)

    # One-hot broadcast expanders (entries 0/1 -> exact in bf16):
    #   eh[h, h*W + w] = 1 : broadcasts q_pool (BC, H) to (BC, HW)
    #   ew[w, h*W + w] = 1 : broadcasts k_pool (BC, W) to (BC, HW)
    pos = jnp.arange(HW)
    eh = (jnp.arange(H)[:, None] == (pos // W)[None, :]).astype(jnp.bfloat16)
    ew = (jnp.arange(W)[:, None] == (pos % W)[None, :]).astype(jnp.bfloat16)

    kernel = functools.partial(_pam_kernel, bc=BC)
    const_buf = pl.Buffered(1)   # grid-constant inputs: no second pipeline buffer

    out = pl.pallas_call(
        kernel,
        out_shape=jax.ShapeDtypeStruct((B, C, HW), jnp.float32),
        grid_spec=pltpu.PrefetchScalarGridSpec(
            num_scalar_prefetch=0,
            grid=(B, n_cblk),
            in_specs=[
                pl.BlockSpec((1, C, HW), lambda b, c: (b, 0, 0)),   # x (f32, full C)
                pl.BlockSpec((1, C, H), lambda b, c: (b, 0, 0)),    # poolW(x) bf16
                pl.BlockSpec((1, C, W), lambda b, c: (b, 0, 0)),    # poolH(x) bf16
                pl.BlockSpec((BC, C), lambda b, c: (c, 0)),         # Wq block
                pl.BlockSpec((BC, 1), lambda b, c: (c, 0)),         # bq block
                pl.BlockSpec((BC, C), lambda b, c: (c, 0)),         # Wk block
                pl.BlockSpec((BC, 1), lambda b, c: (c, 0)),         # bk block
                pl.BlockSpec((BC, C), lambda b, c: (c, 0)),         # Wv block
                pl.BlockSpec((BC, 1), lambda b, c: (c, 0)),         # bv block
                pl.BlockSpec((H, HW), lambda b, c: (0, 0),
                             pipeline_mode=const_buf),              # eh expander
                pl.BlockSpec((W, HW), lambda b, c: (0, 0),
                             pipeline_mode=const_buf),              # ew expander
                pl.BlockSpec(memory_space=pltpu.MemorySpace.SMEM),  # gamma scalar
            ],
            out_specs=pl.BlockSpec((1, BC, HW), lambda b, c: (b, c, 0)),
        ),
        compiler_params=pltpu.CompilerParams(
            dimension_semantics=("parallel", "parallel"),
            vmem_limit_bytes=budget),
    )(x_flat, xpw, xph, wq_bf, bq_c, wk_bf, bk_c, wv_bf, bv_c, eh, ew, gamma_s)
    return out.reshape(B, C, H, W)


def pam_reference(x, params):
    """Pure-JAX reference mirroring the PyTorch forward exactly (f32)."""
    wq, bq, wk, bk, wv, bv, gamma = params
    B, C, H, W = x.shape
    xf = x.reshape(B, C, H * W)
    q = (jnp.einsum('oc,bcs->bos', wq, xf) + bq[None, :, None]).reshape(B, C, H, W)
    k = (jnp.einsum('oc,bcs->bos', wk, xf) + bk[None, :, None]).reshape(B, C, H, W)
    v = (jnp.einsum('oc,bcs->bos', wv, xf) + bv[None, :, None]).reshape(B, C, H, W)
    q_pool = q.mean(axis=3, keepdims=True)           # (B, C, H, 1)
    k_pool = k.mean(axis=2, keepdims=True)           # (B, C, 1, W)
    energy = q_pool @ k_pool                         # (B, C, H, W)
    attn = jax.nn.softmax(energy.reshape(B, C, H * W), axis=-1).reshape(B, C, H, W)
    return gamma[0] * (v * attn) + x


if __name__ == "__main__":
    B, C, H, W = 2, 4, 16, 16
    key = jax.random.PRNGKey(0)
    kx, kq, kbq, kk, kbk, kv, kbv = jax.random.split(key, 7)

    # Deterministic synthetic parameters (shapes from PAM_Module.__init__:
    # three 1x1 convs C->C with bias, plus scalar gamma).
    bound = 1.0 / np.sqrt(C)
    wq = jax.random.uniform(kq, (C, C), jnp.float32, -bound, bound)
    bq = jax.random.uniform(kbq, (C,), jnp.float32, -bound, bound)
    wk = jax.random.uniform(kk, (C, C), jnp.float32, -bound, bound)
    bk = jax.random.uniform(kbk, (C,), jnp.float32, -bound, bound)
    wv = jax.random.uniform(kv, (C, C), jnp.float32, -bound, bound)
    bv = jax.random.uniform(kbv, (C,), jnp.float32, -bound, bound)
    # PyTorch inits gamma to zeros (which makes out == x); use a nonzero
    # deterministic value so the attention path is actually exercised.
    gamma = jnp.full((1,), 0.5, jnp.float32)
    params = (wq, bq, wk, bk, wv, bv, gamma)

    x = jax.random.normal(kx, (B, C, H, W), jnp.float32)

    out = pam_module(x, params)
    out = jax.block_until_ready(out)

    ref = pam_reference(x, params)
    # bf16 MXU inputs (f32 accumulation) + approx reciprocal: error is well
    # under 1e-3 at these magnitudes; the residual path is exact f32.
    np.testing.assert_allclose(np.asarray(out), np.asarray(ref), rtol=1e-3, atol=1e-3)
    print("KERNEL_OK")
</pallas_src>

<mosaic_0001>
module attributes {stable_mosaic.version = 11 : i64} {
  func.func @_pam_kernel(%arg0: i32, %arg1: i32, %arg2: memref<1x4x256xf32, #tpu.memory_space<vmem>>, %arg3: memref<1x4x16xbf16, #tpu.memory_space<vmem>>, %arg4: memref<1x4x16xbf16, #tpu.memory_space<vmem>>, %arg5: memref<4x4xbf16, #tpu.memory_space<vmem>>, %arg6: memref<4x1xf32, #tpu.memory_space<vmem>>, %arg7: memref<4x4xbf16, #tpu.memory_space<vmem>>, %arg8: memref<4x1xf32, #tpu.memory_space<vmem>>, %arg9: memref<4x4xbf16, #tpu.memory_space<vmem>>, %arg10: memref<4x1xf32, #tpu.memory_space<vmem>>, %arg11: memref<16x256xbf16, #tpu.memory_space<vmem>>, %arg12: memref<16x256xbf16, #tpu.memory_space<vmem>>, %arg13: memref<1xf32, #tpu.memory_space<smem>>, %arg14: memref<1x4x256xf32, #tpu.memory_space<vmem>>) attributes {dimension_semantics = [#tpu.dimension_semantics<parallel>, #tpu.dimension_semantics<parallel>], iteration_bounds = array<i64: 2, 1>, scalar_prefetch = 0 : i64, scratch_operands = 0 : i64, tpu.core_type = #tpu.core_type<tc>, window_params = [{transform_indices = @transform_0, window_bounds = array<i64: 1, 4, 256>}, {transform_indices = @transform_1, window_bounds = array<i64: 1, 4, 16>}, {transform_indices = @transform_2, window_bounds = array<i64: 1, 4, 16>}, {transform_indices = @transform_3, window_bounds = array<i64: 4, 4>}, {transform_indices = @transform_4, window_bounds = array<i64: 4, 1>}, {transform_indices = @transform_5, window_bounds = array<i64: 4, 4>}, {transform_indices = @transform_6, window_bounds = array<i64: 4, 1>}, {transform_indices = @transform_7, window_bounds = array<i64: 4, 4>}, {transform_indices = @transform_8, window_bounds = array<i64: 4, 1>}, {pipeline_mode = #tpu.pipeline_mode<synchronous>, transform_indices = @transform_9, window_bounds = array<i64: 16, 256>}, {pipeline_mode = #tpu.pipeline_mode<synchronous>, transform_indices = @transform_10, window_bounds = array<i64: 16, 256>}, {transform_indices = @transform_11, window_bounds = array<i64: 1>}, {transform_indices = @transform_12, window_bounds = array<i64: 1, 4, 256>}]} {
    %c0 = arith.constant 0 : index
    %c0_0 = arith.constant 0 : index
    %c0_1 = arith.constant 0 : index
    %0 = vector.load %arg2[%c0, %c0_0, %c0_1] : memref<1x4x256xf32, #tpu.memory_space<vmem>>, vector<1x4x256xf32>
    %1 = vector.shape_cast %0 : vector<1x4x256xf32> to vector<4x256xf32>
    %2 = arith.truncf %1 : vector<4x256xf32> to vector<4x256xbf16>
    %c0_2 = arith.constant 0 : index
    %c0_3 = arith.constant 0 : index
    %3 = vector.load %arg9[%c0_2, %c0_3] : memref<4x4xbf16, #tpu.memory_space<vmem>>, vector<4x4xbf16>
    %cst = arith.constant dense<0.000000e+00> : vector<4x256xf32>
    %4 = tpu.matmul %3, %2, %cst {dimension_numbers = #tpu.dot_dimension_numbers<[1], [0], [0], [1], [0, 0, 1, 1], [], []>} : vector<4x4xbf16>, vector<4x256xbf16>, vector<4x256xf32> -> vector<4x256xf32>
    %c0_4 = arith.constant 0 : index
    %c0_5 = arith.constant 0 : index
    %5 = vector.load %arg10[%c0_4, %c0_5] : memref<4x1xf32, #tpu.memory_space<vmem>>, vector<4x1xf32>
    %6 = vector.broadcast %5 : vector<4x1xf32> to vector<4x256xf32>
    %7 = arith.addf %4, %6 : vector<4x256xf32>
    %c0_6 = arith.constant 0 : index
    %c0_7 = arith.constant 0 : index
    %8 = vector.load %arg5[%c0_6, %c0_7] : memref<4x4xbf16, #tpu.memory_space<vmem>>, vector<4x4xbf16>
    %c0_8 = arith.constant 0 : index
    %c0_9 = arith.constant 0 : index
    %c0_10 = arith.constant 0 : index
    %9 = vector.load %arg3[%c0_8, %c0_9, %c0_10] : memref<1x4x16xbf16, #tpu.memory_space<vmem>>, vector<1x4x16xbf16>
    %10 = vector.shape_cast %9 : vector<1x4x16xbf16> to vector<4x16xbf16>
    %cst_11 = arith.constant dense<0.000000e+00> : vector<4x16xf32>
    %11 = tpu.matmul %8, %10, %cst_11 {dimension_numbers = #tpu.dot_dimension_numbers<[1], [0], [0], [1], [0, 0, 1, 1], [], []>} : vector<4x4xbf16>, vector<4x16xbf16>, vector<4x16xf32> -> vector<4x16xf32>
    %c0_12 = arith.constant 0 : index
    %c0_13 = arith.constant 0 : index
    %12 = vector.load %arg6[%c0_12, %c0_13] : memref<4x1xf32, #tpu.memory_space<vmem>>, vector<4x1xf32>
    %13 = vector.broadcast %12 : vector<4x1xf32> to vector<4x16xf32>
    %14 = arith.addf %11, %13 : vector<4x16xf32>
    %c0_14 = arith.constant 0 : index
    %c0_15 = arith.constant 0 : index
    %15 = vector.load %arg7[%c0_14, %c0_15] : memref<4x4xbf16, #tpu.memory_space<vmem>>, vector<4x4xbf16>
    %c0_16 = arith.constant 0 : index
    %c0_17 = arith.constant 0 : index
    %c0_18 = arith.constant 0 : index
    %16 = vector.load %arg4[%c0_16, %c0_17, %c0_18] : memref<1x4x16xbf16, #tpu.memory_space<vmem>>, vector<1x4x16xbf16>
    %17 = vector.shape_cast %16 : vector<1x4x16xbf16> to vector<4x16xbf16>
    %cst_19 = arith.constant dense<0.000000e+00> : vector<4x16xf32>
    %18 = tpu.matmul %15, %17, %cst_19 {dimension_numbers = #tpu.dot_dimension_numbers<[1], [0], [0], [1], [0, 0, 1, 1], [], []>} : vector<4x4xbf16>, vector<4x16xbf16>, vector<4x16xf32> -> vector<4x16xf32>
    %c0_20 = arith.constant 0 : index
    %c0_21 = arith.constant 0 : index
    %19 = vector.load %arg8[%c0_20, %c0_21] : memref<4x1xf32, #tpu.memory_space<vmem>>, vector<4x1xf32>
    %20 = vector.broadcast %19 : vector<4x1xf32> to vector<4x16xf32>
    %21 = arith.addf %18, %20 : vector<4x16xf32>
    %22 = arith.truncf %14 : vector<4x16xf32> to vector<4x16xbf16>
    %23 = arith.truncf %21 : vector<4x16xf32> to vector<4x16xbf16>
    %24 = arith.extf %22 : vector<4x16xbf16> to vector<4x16xf32>
    %25 = arith.extf %23 : vector<4x16xbf16> to vector<4x16xf32>
    %cst_22 = arith.constant dense<0xFF800000> : vector<4xf32>
    %26 = vector.multi_reduction <maximumf>, %24, %cst_22 [1] : vector<4x16xf32> to vector<4xf32>
    %27 = vector.shape_cast %26 : vector<4xf32> to vector<4x1xf32>
    %cst_23 = arith.constant dense<0x7F800000> : vector<4xf32>
    %28 = vector.multi_reduction <minimumf>, %24, %cst_23 [1] : vector<4x16xf32> to vector<4xf32>
    %29 = vector.shape_cast %28 : vector<4xf32> to vector<4x1xf32>
    %cst_24 = arith.constant dense<0xFF800000> : vector<4xf32>
    %30 = vector.multi_reduction <maximumf>, %25, %cst_24 [1] : vector<4x16xf32> to vector<4xf32>
    %31 = vector.shape_cast %30 : vector<4xf32> to vector<4x1xf32>
    %cst_25 = arith.constant dense<0x7F800000> : vector<4xf32>
    %32 = vector.multi_reduction <minimumf>, %25, %cst_25 [1] : vector<4x16xf32> to vector<4xf32>
    %33 = vector.shape_cast %32 : vector<4xf32> to vector<4x1xf32>
    %34 = arith.mulf %27, %31 : vector<4x1xf32>
    %35 = arith.mulf %27, %33 : vector<4x1xf32>
    %36 = arith.maximumf %34, %35 : vector<4x1xf32>
    %37 = arith.mulf %29, %31 : vector<4x1xf32>
    %38 = arith.mulf %29, %33 : vector<4x1xf32>
    %39 = arith.maximumf %37, %38 : vector<4x1xf32>
    %40 = arith.maximumf %36, %39 : vector<4x1xf32>
    %c0_26 = arith.constant 0 : index
    %c0_27 = arith.constant 0 : index
    %41 = vector.load %arg11[%c0_26, %c0_27] : memref<16x256xbf16, #tpu.memory_space<vmem>>, vector<16x256xbf16>
    %cst_28 = arith.constant dense<0.000000e+00> : vector<4x256xf32>
    %42 = tpu.matmul %22, %41, %cst_28 {dimension_numbers = #tpu.dot_dimension_numbers<[1], [0], [0], [1], [0, 0, 1, 1], [], []>} : vector<4x16xbf16>, vector<16x256xbf16>, vector<4x256xf32> -> vector<4x256xf32>
    %c0_29 = arith.constant 0 : index
    %c0_30 = arith.constant 0 : index
    %43 = vector.load %arg12[%c0_29, %c0_30] : memref<16x256xbf16, #tpu.memory_space<vmem>>, vector<16x256xbf16>
    %cst_31 = arith.constant dense<0.000000e+00> : vector<4x256xf32>
    %44 = tpu.matmul %23, %43, %cst_31 {dimension_numbers = #tpu.dot_dimension_numbers<[1], [0], [0], [1], [0, 0, 1, 1], [], []>} : vector<4x16xbf16>, vector<16x256xbf16>, vector<4x256xf32> -> vector<4x256xf32>
    %45 = arith.mulf %42, %44 : vector<4x256xf32>
    %46 = vector.broadcast %40 : vector<4x1xf32> to vector<4x256xf32>
    %47 = arith.subf %45, %46 : vector<4x256xf32>
    %48 = math.exp %47 : vector<4x256xf32>
    %c0_32 = arith.constant 0 : index
    %49 = memref.load %arg13[%c0_32] : memref<1xf32, #tpu.memory_space<smem>>
    %cst_33 = arith.constant dense<0.000000e+00> : vector<4xf32>
    %50 = vector.multi_reduction <add>, %48, %cst_33 [1] : vector<4x256xf32> to vector<4xf32>
    %51 = vector.shape_cast %50 : vector<4xf32> to vector<4x1xf32>
    %52 = tpu.reciprocal %51 {approx = true} : vector<4x1xf32> -> vector<4x1xf32>
    %53 = vector.broadcast %49 : f32 to vector<4x1xf32>
    %54 = arith.mulf %53, %52 : vector<4x1xf32>
    %c0_34 = arith.constant 0 : index
    %c0_35 = arith.constant 0 : index
    %c0_36 = arith.constant 0 : index
    %55 = vector.load %arg2[%c0_34, %c0_35, %c0_36] : memref<1x4x256xf32, #tpu.memory_space<vmem>>, vector<1x4x256xf32>
    %56 = vector.shape_cast %55 : vector<1x4x256xf32> to vector<4x256xf32>
    %57 = arith.mulf %7, %48 : vector<4x256xf32>
    %58 = vector.broadcast %54 : vector<4x1xf32> to vector<4x256xf32>
    %59 = arith.mulf %57, %58 : vector<4x256xf32>
    %60 = arith.addf %59, %56 : vector<4x256xf32>
    %c0_37 = arith.constant 0 : index
    %c0_38 = arith.constant 0 : index
    %c0_39 = arith.constant 0 : index
    %61 = vector.load %arg14[%c0_37, %c0_38, %c0_39] : memref<1x4x256xf32, #tpu.memory_space<vmem>>, vector<1x4x256xf32>
    %62 = vector.shape_cast %61 : vector<1x4x256xf32> to vector<4x256xf32>
    %63 = vector.shape_cast %60 : vector<4x256xf32> to vector<1x4x256xf32>
    tpu.vector_store %arg14[%c0_37, %c0_38, %c0_39], %63 {strides = array<i32>} : memref<1x4x256xf32, #tpu.memory_space<vmem>>, vector<1x4x256xf32>,
    return
  }
  func.func @transform_0(%arg0: i32, %arg1: i32) -> (i32, i32, i32) {
    %c0_i32 = arith.constant 0 : i32
    %c0_i32_0 = arith.constant 0 : i32
    %c0_i32_1 = arith.constant 0 : i32
    return %arg0, %c0_i32, %c0_i32_0 : i32, i32, i32
  }
  func.func @transform_1(%arg0: i32, %arg1: i32) -> (i32, i32, i32) {
    %c0_i32 = arith.constant 0 : i32
    %c0_i32_0 = arith.constant 0 : i32
    %c0_i32_1 = arith.constant 0 : i32
    return %arg0, %c0_i32, %c0_i32_0 : i32, i32, i32
  }
  func.func @transform_2(%arg0: i32, %arg1: i32) -> (i32, i32, i32) {
    %c0_i32 = arith.constant 0 : i32
    %c0_i32_0 = arith.constant 0 : i32
    %c0_i32_1 = arith.constant 0 : i32
    return %arg0, %c0_i32, %c0_i32_0 : i32, i32, i32
  }
  func.func @transform_3(%arg0: i32, %arg1: i32) -> (i32, i32) {
    %c0_i32 = arith.constant 0 : i32
    %c0_i32_0 = arith.constant 0 : i32
    return %arg1, %c0_i32 : i32, i32
  }
  func.func @transform_4(%arg0: i32, %arg1: i32) -> (i32, i32) {
    %c0_i32 = arith.constant 0 : i32
    %c0_i32_0 = arith.constant 0 : i32
    return %arg1, %c0_i32 : i32, i32
  }
  func.func @transform_5(%arg0: i32, %arg1: i32) -> (i32, i32) {
    %c0_i32 = arith.constant 0 : i32
    %c0_i32_0 = arith.constant 0 : i32
    return %arg1, %c0_i32 : i32, i32
  }
  func.func @transform_6(%arg0: i32, %arg1: i32) -> (i32, i32) {
    %c0_i32 = arith.constant 0 : i32
    %c0_i32_0 = arith.constant 0 : i32
    return %arg1, %c0_i32 : i32, i32
  }
  func.func @transform_7(%arg0: i32, %arg1: i32) -> (i32, i32) {
    %c0_i32 = arith.constant 0 : i32
    %c0_i32_0 = arith.constant 0 : i32
    return %arg1, %c0_i32 : i32, i32
  }
  func.func @transform_8(%arg0: i32, %arg1: i32) -> (i32, i32) {
    %c0_i32 = arith.constant 0 : i32
    %c0_i32_0 = arith.constant 0 : i32
    return %arg1, %c0_i32 : i32, i32
  }
  func.func @transform_9(%arg0: i32, %arg1: i32) -> (i32, i32) {
    %c0_i32 = arith.constant 0 : i32
    %c0_i32_0 = arith.constant 0 : i32
    %c0_i32_1 = arith.constant 0 : i32
    return %c0_i32, %c0_i32_0 : i32, i32
  }
  func.func @transform_10(%arg0: i32, %arg1: i32) -> (i32, i32) {
    %c0_i32 = arith.constant 0 : i32
    %c0_i32_0 = arith.constant 0 : i32
    %c0_i32_1 = arith.constant 0 : i32
    return %c0_i32, %c0_i32_0 : i32, i32
  }
  func.func @transform_11(%arg0: i32, %arg1: i32) -> i32 {
    %c0_i32 = arith.constant 0 : i32
    %c0_i32_0 = arith.constant 0 : i32
    return %c0_i32 : i32
  }
  func.func @transform_12(%arg0: i32, %arg1: i32) -> (i32, i32, i32) {
    %c0_i32 = arith.constant 0 : i32
    %c0_i32_0 = arith.constant 0 : i32
    return %arg0, %arg1, %c0_i32 : i32, i32, i32
  }
}

</mosaic_0001>

<llo_original>
// kernel: tpu_custom_call.1
$region0: #{tpu_custom_call.1}
  #allocation0 [shape = 'u32[]', space=smem, size = 0x4, offset = 0x4, fixed_abs, tag = 'smem constant byte address 0x4 - core index']
  #allocation1 [shape = 'u32[144,128]{1,0:T(1,128)}', space=vmem, size = 0x12000, scoped, tag = 'internal scratch']
  #allocation2 [shape = 'f32[1]{0:T(128)S(6)}', space=smem, size = 0x200, scoped, tag = 'scoped memory for tpu_custom_call.1']
  %s0 = inlined_call_operand.vmem [shape: f32[2,4,256], index: 0, kind: input, shape index: {}]
  %s1 = inlined_call_operand.hbm [shape: bf16[2,4,16], index: 1, kind: input, shape index: {}]
  %s2 = inlined_call_operand.hbm [shape: bf16[2,4,16], index: 2, kind: input, shape index: {}]
  %s3 = inlined_call_operand.hbm [shape: bf16[4,4], index: 3, kind: input, shape index: {}]
  %s4 = inlined_call_operand.vmem [shape: f32[4,1], index: 4, kind: input, shape index: {}]
  %s5 = inlined_call_operand.hbm [shape: bf16[4,4], index: 5, kind: input, shape index: {}]
  %s6 = inlined_call_operand.vmem [shape: f32[4,1], index: 6, kind: input, shape index: {}]
  %s7 = inlined_call_operand.hbm [shape: bf16[4,4], index: 7, kind: input, shape index: {}]
  %s8 = inlined_call_operand.vmem [shape: f32[4,1], index: 8, kind: input, shape index: {}]
  %s9 = inlined_call_operand.vmem [shape: bf16[16,256], index: 9, kind: input, shape index: {}]
  %s10 = inlined_call_operand.vmem [shape: bf16[16,256], index: 10, kind: input, shape index: {}]
  %s11 = inlined_call_operand.<no memory space> [shape: f32[1], index: 11, kind: input, shape index: {}]
  %s12 = inlined_call_operand.hbm [shape: f32[2,4,256], index: 12, kind: output, shape index: {}]
  %s13 = sld [smem:[#allocation0]]
  $region101: #{tpu_custom_call.1} parent=0
    _
  %s15 = ssub.s32 1, %s13
  %s16 = scalar_select 0, %s15, %s13
  %17 = sst [smem:[#allocation2]] %s11
  $region1: #{tpu_custom_call.1} parent=0
    #allocation3 [shape = 'u8[2048]{0}', space=vmem, size = 0x800, scoped, tag = 'input window, operand 1']
    #allocation4 [shape = 's32[2]{0}', space=sflag, size = 0x8, scoped, tag = 'scoped memory for tpu_custom_call.1']
    #allocation5 [shape = 's32[2]{0}', space=sflag, size = 0x8, scoped, tag = 'scoped memory for tpu_custom_call.1']
    #allocation6 [shape = 'u8[2048]{0}', space=vmem, size = 0x800, scoped, tag = 'input window, operand 2']
    #allocation7 [shape = 's32[2]{0}', space=sflag, size = 0x8, scoped, tag = 'scoped memory for tpu_custom_call.1']
    #allocation8 [shape = 'u8[1024]{0}', space=vmem, size = 0x400, scoped, tag = 'input window, operand 3, single buffered']
    #allocation9 [shape = 'u8[1024]{0}', space=vmem, size = 0x400, scoped, tag = 'input window, operand 5, single buffered']
    #allocation10 [shape = 's32[1]{0}', space=sflag, size = 0x4, scoped, tag = 'scoped memory for tpu_custom_call.1']
    #allocation11 [shape = 'u8[1024]{0}', space=vmem, size = 0x400, scoped, tag = 'input window, operand 7, single buffered']
    #allocation12 [shape = 'u8[8192]{0}', space=vmem, size = 0x2000, scoped, tag = 'output window, operand 0']
    %18 = vsyncpa [#allocation4], 0
    %s19 = scalar_lea.sflag [#allocation4], 1
    %20 = vsyncpa %s19, 0
    %21 = vsyncpa [#allocation7], 0
    %s22 = scalar_lea.sflag [#allocation7], 1
    %23 = vsyncpa %s22, 0
    %24 = vsyncpa [#allocation10], 0
    %25 = vsyncpa [#allocation5], 0
    %s26 = scalar_lea.sflag [#allocation5], 1
    %27 = vsyncpa %s26, 0
    loop: start=0, step=1, limit=4
    $region2: #{tpu_custom_call.1} parent=1 // loop_pre_header
      _
    $region3: #{tpu_custom_call.1} parent=1 // loop_header
      %s29 = sphi 0, %s33
      %p30 = scmp.ge.s32.totalorder %s29, 4
      %s36 = sphi 0, %s48
      %s37 = sphi 0, %s44
      %s38 = sphi 0, %s36
      %s39 = sphi 0, %s37
      %s40 = sphi 0, %s38
      %s41 = sphi 0, %s39
      %s51 = sphi 0, %s53
      %s54 = sphi 0, %s51
      %s55 = sphi 0, %s54
      %s71 = sphi 0, %s55
      %s77 = sphi 0, %s79
      %s80 = sphi 0, %s77
      %s81 = sphi 0, %s80
      %s97 = sphi 0, %s81
      %s103 = sphi 0, %s105
      %s106 = sphi 0, %s103
      %s107 = sphi 0, %s106
      %s123 = sphi 0, %s107
      %s129 = sphi 0, %s131
      %s132 = sphi 0, %s129
      %s133 = sphi 0, %s132
      %s149 = sphi 0, %s133
      %s155 = sphi 0, %s157
      %s158 = sphi 0, %s155
      %s159 = sphi 0, %s158
      %s175 = sphi 0, %s159
      %s181 = sphi 0, %s183
      %s184 = sphi 0, %s181
      %s185 = sphi 0, %s184
      %s201 = sphi 0, %s185
      %s207 = sphi 0, %s209
      %s210 = sphi 0, %s207
      %s211 = sphi 0, %s210
      %s227 = sphi 0, %s211
      %s233 = sphi 0, %s235
      %s236 = sphi 0, %s233
      %s237 = sphi 0, %s236
      %s253 = sphi 0, %s237
      %s259 = sphi 0, %s261
      %s262 = sphi 0, %s259
      %s263 = sphi 0, %s262
      %s279 = sphi 0, %s263
      %s283 = sphi 0, %s283
      %s285 = sphi 0, %s283
      %s286 = sphi 0, %s285
      %s300 = sphi 0, %s286
      %s304 = sphi 0, %s304
      %s306 = sphi 0, %s304
      %s307 = sphi 0, %s306
      %s321 = sphi 0, %s307
      %s325 = sphi 0, %s325
      %s327 = sphi 0, %s325
      %s328 = sphi 0, %s327
      %s342 = sphi 0, %s328
      %s350 = sphi 0, %s352
      %s353 = sphi 0, %s350
      %s354 = sphi 0, %s353
      %s370 = sphi 0, %s354
    $region4: #{tpu_custom_call.1} parent=1 // loop_header_branch
      %32 = sbr.rel (%p30) target = $region8
    $region5: #{tpu_custom_call.1} parent=1 // loop_body
      %s34 = ssub.s32 %s29, 1
      %s35 = ssub.s32 %s29, 2
      %s42 = sadd.s32 1, %s37
      %p43 = scmp.ge.s32.totalorder %s42, 1
      %s44 = scalar_select %p43, 0, %s42
      %s45 = sadd.s32 1, %s36
      %s46 = scalar_select %p43, %s45, %s36
      %p47 = scmp.ge.s32.totalorder %s46, 2
      %s48 = scalar_select %p47, 0, %s46
      %s49 = ssub.s32 %s36, %s48
      %p50 = scmp.eq.s32.totalorder %s49, 0
      %s52 = sadd.s32 %s51, 1
      %s53 = scalar_select %p50, %s51, %s52
      %p56 = pneg %p50
      %p57 = scmp.eq.s32.totalorder %s29, 1
      %p58 = por %p56, %p57
      %p59 = scmp.ne.s32.totalorder %s51, %s54
      %p60 = scmp.eq.s32.totalorder %s29, 0
      %p61 = por %p59, %p60
      %p62 = scmp.ne.s32.totalorder %s51, %s54
      %p63 = scmp.eq.s32.totalorder %s34, 1
      %p64 = por %p62, %p63
      %p65 = scmp.ne.s32.totalorder %s54, %s55
      %p66 = scmp.eq.s32.totalorder %s34, 0
      %p67 = por %p65, %p66
      %p68 = scmp.ne.s32.totalorder %s54, %s55
      %p69 = scmp.eq.s32.totalorder %s35, 1
      %p70 = por %p68, %p69
      %p72 = scmp.ne.s32.totalorder %s55, %s71
      %p73 = scmp.eq.s32.totalorder %s35, 0
      %p74 = por %p72, %p73
      %s75 = ssub.s32 %s36, %s48
      %p76 = scmp.eq.s32.totalorder %s75, 0
      %s78 = sadd.s32 %s77, 1
      %s79 = scalar_select %p76, %s77, %s78
      %p82 = pneg %p76
      %p83 = scmp.eq.s32.totalorder %s29, 1
      %p84 = por %p82, %p83
      %p85 = scmp.ne.s32.totalorder %s77, %s80
      %p86 = scmp.eq.s32.totalorder %s29, 0
      %p87 = por %p85, %p86
      %p88 = scmp.ne.s32.totalorder %s77, %s80
      %p89 = scmp.eq.s32.totalorder %s34, 1
      %p90 = por %p88, %p89
      %p91 = scmp.ne.s32.totalorder %s80, %s81
      %p92 = scmp.eq.s32.totalorder %s34, 0
      %p93 = por %p91, %p92
      %p94 = scmp.ne.s32.totalorder %s80, %s81
      %p95 = scmp.eq.s32.totalorder %s35, 1
      %p96 = por %p94, %p95
      %p98 = scmp.ne.s32.totalorder %s81, %s97
      %p99 = scmp.eq.s32.totalorder %s35, 0
      %p100 = por %p98, %p99
      %s101 = ssub.s32 %s36, %s48
      %p102 = scmp.eq.s32.totalorder %s101, 0
      %s104 = sadd.s32 %s103, 1
      %s105 = scalar_select %p102, %s103, %s104
      %p108 = pneg %p102
      %p109 = scmp.eq.s32.totalorder %s29, 1
      %p110 = por %p108, %p109
      %p111 = scmp.ne.s32.totalorder %s103, %s106
      %p112 = scmp.eq.s32.totalorder %s29, 0
      %p113 = por %p111, %p112
      %p114 = scmp.ne.s32.totalorder %s103, %s106
      %p115 = scmp.eq.s32.totalorder %s34, 1
      %p116 = por %p114, %p115
      %p117 = scmp.ne.s32.totalorder %s106, %s107
      %p118 = scmp.eq.s32.totalorder %s34, 0
      %p119 = por %p117, %p118
      %p120 = scmp.ne.s32.totalorder %s106, %s107
      %p121 = scmp.eq.s32.totalorder %s35, 1
      %p122 = por %p120, %p121
      %p124 = scmp.ne.s32.totalorder %s107, %s123
      %p125 = scmp.eq.s32.totalorder %s35, 0
      %p126 = por %p124, %p125
      %s127 = ssub.s32 %s37, %s44
      %p128 = scmp.eq.s32.totalorder %s127, 0
      %s130 = sadd.s32 %s129, 1
      %s131 = scalar_select %p128, %s129, %s130
      %p134 = pneg %p128
      %p135 = scmp.eq.s32.totalorder %s29, 1
      %p136 = por %p134, %p135
      %p137 = scmp.ne.s32.totalorder %s129, %s132
      %p138 = scmp.eq.s32.totalorder %s29, 0
      %p139 = por %p137, %p138
      %p140 = scmp.ne.s32.totalorder %s129, %s132
      %p141 = scmp.eq.s32.totalorder %s34, 1
      %p142 = por %p140, %p141
      %p143 = scmp.ne.s32.totalorder %s132, %s133
      %p144 = scmp.eq.s32.totalorder %s34, 0
      %p145 = por %p143, %p144
      %p146 = scmp.ne.s32.totalorder %s132, %s133
      %p147 = scmp.eq.s32.totalorder %s35, 1
      %p148 = por %p146, %p147
      %p150 = scmp.ne.s32.totalorder %s133, %s149
      %p151 = scmp.eq.s32.totalorder %s35, 0
      %p152 = por %p150, %p151
      %s153 = ssub.s32 %s37, %s44
      %p154 = scmp.eq.s32.totalorder %s153, 0
      %s156 = sadd.s32 %s155, 1
      %s157 = scalar_select %p154, %s155, %s156
      %p160 = pneg %p154
      %p161 = scmp.eq.s32.totalorder %s29, 1
      %p162 = por %p160, %p161
      %p163 = scmp.ne.s32.totalorder %s155, %s158
      %p164 = scmp.eq.s32.totalorder %s29, 0
      %p165 = por %p163, %p164
      %p166 = scmp.ne.s32.totalorder %s155, %s158
      %p167 = scmp.eq.s32.totalorder %s34, 1
      %p168 = por %p166, %p167
      %p169 = scmp.ne.s32.totalorder %s158, %s159
      %p170 = scmp.eq.s32.totalorder %s34, 0
      %p171 = por %p169, %p170
      %p172 = scmp.ne.s32.totalorder %s158, %s159
      %p173 = scmp.eq.s32.totalorder %s35, 1
      %p174 = por %p172, %p173
      %p176 = scmp.ne.s32.totalorder %s159, %s175
      %p177 = scmp.eq.s32.totalorder %s35, 0
      %p178 = por %p176, %p177
      %s179 = ssub.s32 %s37, %s44
      %p180 = scmp.eq.s32.totalorder %s179, 0
      %s182 = sadd.s32 %s181, 1
      %s183 = scalar_select %p180, %s181, %s182
      %p186 = pneg %p180
      %p187 = scmp.eq.s32.totalorder %s29, 1
      %p188 = por %p186, %p187
      %p189 = scmp.ne.s32.totalorder %s181, %s184
      %p190 = scmp.eq.s32.totalorder %s29, 0
      %p191 = por %p189, %p190
      %p192 = scmp.ne.s32.totalorder %s181, %s184
      %p193 = scmp.eq.s32.totalorder %s34, 1
      %p194 = por %p192, %p193
      %p195 = scmp.ne.s32.totalorder %s184, %s185
      %p196 = scmp.eq.s32.totalorder %s34, 0
      %p197 = por %p195, %p196
      %p198 = scmp.ne.s32.totalorder %s184, %s185
      %p199 = scmp.eq.s32.totalorder %s35, 1
      %p200 = por %p198, %p199
      %p202 = scmp.ne.s32.totalorder %s185, %s201
      %p203 = scmp.eq.s32.totalorder %s35, 0
      %p204 = por %p202, %p203
      %s205 = ssub.s32 %s37, %s44
      %p206 = scmp.eq.s32.totalorder %s205, 0
      %s208 = sadd.s32 %s207, 1
      %s209 = scalar_select %p206, %s207, %s208
      %p212 = pneg %p206
      %p213 = scmp.eq.s32.totalorder %s29, 1
      %p214 = por %p212, %p213
      %p215 = scmp.ne.s32.totalorder %s207, %s210
      %p216 = scmp.eq.s32.totalorder %s29, 0
      %p217 = por %p215, %p216
      %p218 = scmp.ne.s32.totalorder %s207, %s210
      %p219 = scmp.eq.s32.totalorder %s34, 1
      %p220 = por %p218, %p219
      %p221 = scmp.ne.s32.totalorder %s210, %s211
      %p222 = scmp.eq.s32.totalorder %s34, 0
      %p223 = por %p221, %p222
      %p224 = scmp.ne.s32.totalorder %s210, %s211
      %p225 = scmp.eq.s32.totalorder %s35, 1
      %p226 = por %p224, %p225
      %p228 = scmp.ne.s32.totalorder %s211, %s227
      %p229 = scmp.eq.s32.totalorder %s35, 0
      %p230 = por %p228, %p229
      %s231 = ssub.s32 %s37, %s44
      %p232 = scmp.eq.s32.totalorder %s231, 0
      %s234 = sadd.s32 %s233, 1
      %s235 = scalar_select %p232, %s233, %s234
      %p238 = pneg %p232
      %p239 = scmp.eq.s32.totalorder %s29, 1
      %p240 = por %p238, %p239
      %p241 = scmp.ne.s32.totalorder %s233, %s236
      %p242 = scmp.eq.s32.totalorder %s29, 0
      %p243 = por %p241, %p242
      %p244 = scmp.ne.s32.totalorder %s233, %s236
      %p245 = scmp.eq.s32.totalorder %s34, 1
      %p246 = por %p244, %p245
      %p247 = scmp.ne.s32.totalorder %s236, %s237
      %p248 = scmp.eq.s32.totalorder %s34, 0
      %p249 = por %p247, %p248
      %p250 = scmp.ne.s32.totalorder %s236, %s237
      %p251 = scmp.eq.s32.totalorder %s35, 1
      %p252 = por %p250, %p251
      %p254 = scmp.ne.s32.totalorder %s237, %s253
      %p255 = scmp.eq.s32.totalorder %s35, 0
      %p256 = por %p254, %p255
      %s257 = ssub.s32 %s37, %s44
      %p258 = scmp.eq.s32.totalorder %s257, 0
      %s260 = sadd.s32 %s259, 1
      %s261 = scalar_select %p258, %s259, %s260
      %p264 = pneg %p258
      %p265 = scmp.eq.s32.totalorder %s29, 1
      %p266 = por %p264, %p265
      %p267 = scmp.ne.s32.totalorder %s259, %s262
      %p268 = scmp.eq.s32.totalorder %s29, 0
      %p269 = por %p267, %p268
      %p270 = scmp.ne.s32.totalorder %s259, %s262
      %p271 = scmp.eq.s32.totalorder %s34, 1
      %p272 = por %p270, %p271
      %p273 = scmp.ne.s32.totalorder %s262, %s263
      %p274 = scmp.eq.s32.totalorder %s34, 0
      %p275 = por %p273, %p274
      %p276 = scmp.ne.s32.totalorder %s262, %s263
      %p277 = scmp.eq.s32.totalorder %s35, 1
      %p278 = por %p276, %p277
      %p280 = scmp.ne.s32.totalorder %s263, %s279
      %p281 = scmp.eq.s32.totalorder %s35, 0
      %p282 = por %p280, %p281
      %s284 = sadd.s32 %s283, 1
      %p287 = scmp.eq.s32.totalorder %s29, 1
      %p288 = scmp.ne.s32.totalorder %s283, %s285
      %p289 = scmp.eq.s32.totalorder %s29, 0
      %p290 = por %p288, %p289
      %p291 = scmp.ne.s32.totalorder %s283, %s285
      %p292 = scmp.eq.s32.totalorder %s34, 1
      %p293 = por %p291, %p292
      %p294 = scmp.ne.s32.totalorder %s285, %s286
      %p295 = scmp.eq.s32.totalorder %s34, 0
      %p296 = por %p294, %p295
      %p297 = scmp.ne.s32.totalorder %s285, %s286
      %p298 = scmp.eq.s32.totalorder %s35, 1
      %p299 = por %p297, %p298
      %p301 = scmp.ne.s32.totalorder %s286, %s300
      %p302 = scmp.eq.s32.totalorder %s35, 0
      %p303 = por %p301, %p302
      %s305 = sadd.s32 %s304, 1
      %p308 = scmp.eq.s32.totalorder %s29, 1
      %p309 = scmp.ne.s32.totalorder %s304, %s306
      %p310 = scmp.eq.s32.totalorder %s29, 0
      %p311 = por %p309, %p310
      %p312 = scmp.ne.s32.totalorder %s304, %s306
      %p313 = scmp.eq.s32.totalorder %s34, 1
      %p314 = por %p312, %p313
      %p315 = scmp.ne.s32.totalorder %s306, %s307
      %p316 = scmp.eq.s32.totalorder %s34, 0
      %p317 = por %p315, %p316
      %p318 = scmp.ne.s32.totalorder %s306, %s307
      %p319 = scmp.eq.s32.totalorder %s35, 1
      %p320 = por %p318, %p319
      %p322 = scmp.ne.s32.totalorder %s307, %s321
      %p323 = scmp.eq.s32.totalorder %s35, 0
      %p324 = por %p322, %p323
      %s326 = sadd.s32 %s325, 1
      %p329 = scmp.eq.s32.totalorder %s29, 1
      %p330 = scmp.ne.s32.totalorder %s325, %s327
      %p331 = scmp.eq.s32.totalorder %s29, 0
      %p332 = por %p330, %p331
      %p333 = scmp.ne.s32.totalorder %s325, %s327
      %p334 = scmp.eq.s32.totalorder %s34, 1
      %p335 = por %p333, %p334
      %p336 = scmp.ne.s32.totalorder %s327, %s328
      %p337 = scmp.eq.s32.totalorder %s34, 0
      %p338 = por %p336, %p337
      %p339 = scmp.ne.s32.totalorder %s327, %s328
      %p340 = scmp.eq.s32.totalorder %s35, 1
      %p341 = por %p339, %p340
      %p343 = scmp.ne.s32.totalorder %s328, %s342
      %p344 = scmp.eq.s32.totalorder %s35, 0
      %p345 = por %p343, %p344
      %s346 = ssub.s32 %s36, %s48
      %s347 = ssub.s32 %s37, %s44
      %s348 = sor.u32 %s346, %s347
      %p349 = scmp.eq.s32.totalorder %s348, 0
      %s351 = sadd.s32 %s350, 1
      %s352 = scalar_select %p349, %s350, %s351
      %p355 = pneg %p349
      %p356 = scmp.eq.s32.totalorder %s29, 1
      %p357 = por %p355, %p356
      %p358 = scmp.ne.s32.totalorder %s350, %s353
      %p359 = scmp.eq.s32.totalorder %s29, 0
      %p360 = por %p358, %p359
      %p361 = scmp.ne.s32.totalorder %s350, %s353
      %p362 = scmp.eq.s32.totalorder %s34, 1
      %p363 = por %p361, %p362
      %p364 = scmp.ne.s32.totalorder %s353, %s354
      %p365 = scmp.eq.s32.totalorder %s34, 0
      %p366 = por %p364, %p365
      %p367 = scmp.ne.s32.totalorder %s353, %s354
      %p368 = scmp.eq.s32.totalorder %s35, 1
      %p369 = por %p367, %p368
      %p371 = scmp.ne.s32.totalorder %s354, %s370
      %p372 = scmp.eq.s32.totalorder %s35, 0
      %p373 = por %p371, %p372
      %p374 = scmp.le.s32.totalorder 1, %s29
      %p375 = scmp.lt.s32.totalorder %s29, 3
      %p376 = pnand %p374, %p375
      %p377 = pneg %p376
      // Predicated region
      $region9: #{tpu_custom_call.1} parent=5 // pred_check
        _
      $region10: #{tpu_custom_call.1} parent=5 // pred_check_branch
        %379 = sbr.rel (%p376) target = $region12
      $region11: #{tpu_custom_call.1} parent=5 // pred_region
        %s380 = ssub.s32 %s29, 1
        // Predicated region
        $region13: #{tpu_custom_call.1} parent=11 // pred_check
          %p381 = pneg %p145
        $region14: #{tpu_custom_call.1} parent=11 // pred_check_branch
          %383 = sbr.rel (%p381) target = $region16
        $region15: #{tpu_custom_call.1} parent=11 // pred_region
          %s385 = ssub.s32 32, 32
          %386 = vsyncadd [#allocation7], %s385
          %s387 = smul.addr %s39, 32
          %s388 = scalar_lea.hbm %s3, %s387
          %s390 = sshll.u32 [#allocation8], 4
          %s391 = int_to_ptr.vmem [resolvable:$true] %s390
          %393 = dma.hbm_to_vmem [thread:$0]  %s388, 32, %s391, [#allocation7]
        $region16: #{tpu_custom_call.1} parent=11 // pred_fallthru
          _
        // Predicated region
        $region17: #{tpu_custom_call.1} parent=11 // pred_check
          %p394 = pneg %p171
        $region18: #{tpu_custom_call.1} parent=11 // pred_check_branch
          %396 = sbr.rel (%p394) target = $region20
        $region19: #{tpu_custom_call.1} parent=11 // pred_region
          %p397 = scmp.lt.s32.totalorder %s39, 0
          %s398 = scalar_select %p397, %s39, 0
          %s399 = smul.addr %s398, 4
          %s400 = scalar_lea.vmem %s4, %s399
        $region20: #{tpu_custom_call.1} parent=11 // pred_fallthru
          _
        // Predicated region
        $region21: #{tpu_custom_call.1} parent=11 // pred_check
          %p401 = pneg %p197
        $region22: #{tpu_custom_call.1} parent=11 // pred_check_branch
          %403 = sbr.rel (%p401) target = $region24
        $region23: #{tpu_custom_call.1} parent=11 // pred_region
          %s405 = ssub.s32 32, 32
          %406 = vsyncadd [#allocation10], %s405
          %s407 = smul.addr %s39, 32
          %s408 = scalar_lea.hbm %s5, %s407
          %s410 = sshll.u32 [#allocation9], 4
          %s411 = int_to_ptr.vmem [resolvable:$true] %s410
          %413 = dma.hbm_to_vmem [thread:$0]  %s408, 32, %s411, [#allocation10]
        $region24: #{tpu_custom_call.1} parent=11 // pred_fallthru
          _
        // Predicated region
        $region25: #{tpu_custom_call.1} parent=11 // pred_check
          %p414 = pneg %p223
        $region26: #{tpu_custom_call.1} parent=11 // pred_check_branch
          %416 = sbr.rel (%p414) target = $region28
        $region27: #{tpu_custom_call.1} parent=11 // pred_region
          %p417 = scmp.lt.s32.totalorder %s39, 0
          %s418 = scalar_select %p417, %s39, 0
          %s419 = smul.addr %s418, 4
          %s420 = scalar_lea.vmem %s6, %s419
        $region28: #{tpu_custom_call.1} parent=11 // pred_fallthru
          _
        // Predicated region
        $region29: #{tpu_custom_call.1} parent=11 // pred_check
          %p421 = pneg %p249
        $region30: #{tpu_custom_call.1} parent=11 // pred_check_branch
          %423 = sbr.rel (%p421) target = $region32
        $region31: #{tpu_custom_call.1} parent=11 // pred_region
          %s425 = ssub.s32 32, 32
          %426 = vsyncadd [#allocation10], %s425
          %s427 = smul.addr %s39, 32
          %s428 = scalar_lea.hbm %s7, %s427
          %s430 = sshll.u32 [#allocation11], 4
          %s431 = int_to_ptr.vmem [resolvable:$true] %s430
          %433 = dma.hbm_to_vmem [thread:$0]  %s428, 32, %s431, [#allocation10]
        $region32: #{tpu_custom_call.1} parent=11 // pred_fallthru
          _
        // Predicated region
        $region33: #{tpu_custom_call.1} parent=11 // pred_check
          %p434 = pneg %p275
        $region34: #{tpu_custom_call.1} parent=11 // pred_check_branch
          %436 = sbr.rel (%p434) target = $region36
        $region35: #{tpu_custom_call.1} parent=11 // pred_region
          %p437 = scmp.lt.s32.totalorder %s39, 0
          %s438 = scalar_select %p437, %s39, 0
          %s439 = smul.addr %s438, 4
          %s440 = scalar_lea.vmem %s8, %s439
        $region36: #{tpu_custom_call.1} parent=11 // pred_fallthru
          _
        // Predicated region
        $region37: #{tpu_custom_call.1} parent=11 // pred_check
          %p441 = pneg %p296
        $region38: #{tpu_custom_call.1} parent=11 // pred_check_branch
          %443 = sbr.rel (%p441) target = $region40
        $region39: #{tpu_custom_call.1} parent=11 // pred_region
          _
        $region40: #{tpu_custom_call.1} parent=11 // pred_fallthru
          _
        // Predicated region
        $region41: #{tpu_custom_call.1} parent=11 // pred_check
          %p444 = pneg %p317
        $region42: #{tpu_custom_call.1} parent=11 // pred_check_branch
          %446 = sbr.rel (%p444) target = $region44
        $region43: #{tpu_custom_call.1} parent=11 // pred_region
          _
        $region44: #{tpu_custom_call.1} parent=11 // pred_fallthru
          _
        // Predicated region
        $region45: #{tpu_custom_call.1} parent=11 // pred_check
          %p447 = pneg %p338
        $region46: #{tpu_custom_call.1} parent=11 // pred_check_branch
          %449 = sbr.rel (%p447) target = $region48
        $region47: #{tpu_custom_call.1} parent=11 // pred_region
          _
        $region48: #{tpu_custom_call.1} parent=11 // pred_fallthru
          _
      $region12: #{tpu_custom_call.1} parent=5 // pred_fallthru
        _
      %p450 = scmp.lt.s32.totalorder %s29, 2
      // Predicated region
      $region49: #{tpu_custom_call.1} parent=5 // pred_check
        %p451 = pneg %p450
      $region50: #{tpu_custom_call.1} parent=5 // pred_check_branch
        %453 = sbr.rel (%p451) target = $region52
      $region51: #{tpu_custom_call.1} parent=5 // pred_region
        // Predicated region
        $region53: #{tpu_custom_call.1} parent=51 // pred_check
          %p454 = pneg %p61
        $region54: #{tpu_custom_call.1} parent=51 // pred_check_branch
          %456 = sbr.rel (%p454) target = $region56
        $region55: #{tpu_custom_call.1} parent=51 // pred_region
          %p457 = scmp.lt.s32.totalorder %s36, 1
          %s458 = scalar_select %p457, %s36, 1
          %s459 = smul.addr %s458, 2
          %s460 = smul.addr %s459, 4
          %s461 = scalar_lea.vmem %s0, %s460
        $region56: #{tpu_custom_call.1} parent=51 // pred_fallthru
          _
        // Predicated region
        $region57: #{tpu_custom_call.1} parent=51 // pred_check
          %p462 = pneg %p87
        $region58: #{tpu_custom_call.1} parent=51 // pred_check_branch
          %464 = sbr.rel (%p462) target = $region60
        $region59: #{tpu_custom_call.1} parent=51 // pred_region
          %s465 = sand.u32 %s77, 1
          %s466 = scalar_lea.sflag [#allocation4], %s465
          %s467 = sand.u32 %s77, 1
          %s468 = smul.addr %s467, 2
          %s469 = scalar_lea.vmem [#allocation3], %s468
          %s471 = ssub.s32 32, 32
          %472 = vsyncadd %s466, %s471
          %s473 = smul.addr %s36, 32
          %s474 = scalar_lea.hbm %s1, %s473
          %s476 = sshll.u32 %s469, 4
          %s477 = int_to_ptr.vmem [resolvable:$true] %s476
          %479 = dma.hbm_to_vmem [thread:$0]  %s474, 32, %s477, %s466
        $region60: #{tpu_custom_call.1} parent=51 // pred_fallthru
          _
        // Predicated region
        $region61: #{tpu_custom_call.1} parent=51 // pred_check
          %p480 = pneg %p113
        $region62: #{tpu_custom_call.1} parent=51 // pred_check_branch
          %482 = sbr.rel (%p480) target = $region64
        $region63: #{tpu_custom_call.1} parent=51 // pred_region
          %s483 = sand.u32 %s29, 1
          %s484 = scalar_lea.sflag [#allocation7], %s483
          %s485 = sand.u32 %s103, 1
          %s486 = smul.addr %s485, 2
          %s487 = scalar_lea.vmem [#allocation6], %s486
          %s489 = ssub.s32 32, 32
          %490 = vsyncadd %s484, %s489
          %s491 = smul.addr %s36, 32
          %s492 = scalar_lea.hbm %s2, %s491
          %s494 = sshll.u32 %s487, 4
          %s495 = int_to_ptr.vmem [resolvable:$true] %s494
          %497 = dma.hbm_to_vmem [thread:$0]  %s492, 32, %s495, %s484
        $region64: #{tpu_custom_call.1} parent=51 // pred_fallthru
          _
      $region52: #{tpu_custom_call.1} parent=5 // pred_fallthru
        _
      %p498 = scmp.le.s32.totalorder 1, %s29
      %p499 = scmp.lt.s32.totalorder %s29, 3
      %p500 = pnand %p498, %p499
      %p501 = pneg %p500
      // Predicated region
      $region65: #{tpu_custom_call.1} parent=5 // pred_check
        _
      $region66: #{tpu_custom_call.1} parent=5 // pred_check_branch
        %503 = sbr.rel (%p500) target = $region68
      $region67: #{tpu_custom_call.1} parent=5 // pred_region
        %s504 = ssub.s32 %s29, 1
        %s505 = sand.u32 %s80, 1
        %s506 = scalar_lea.sflag [#allocation4], %s505
        %s507 = sand.u32 %s80, 1
        %s508 = smul.addr %s507, 2
        %s509 = scalar_lea.vmem [#allocation3], %s508
        // Predicated region
        $region69: #{tpu_custom_call.1} parent=67 // pred_check
          %p510 = pneg %p93
        $region70: #{tpu_custom_call.1} parent=67 // pred_check_branch
          %512 = sbr.rel (%p510) target = $region72
        $region71: #{tpu_custom_call.1} parent=67 // pred_region
          %513 = dma.done %s506, 32
        $region72: #{tpu_custom_call.1} parent=67 // pred_fallthru
          _
        %s514 = sand.u32 %s34, 1
        %s515 = scalar_lea.sflag [#allocation7], %s514
        %s516 = sand.u32 %s106, 1
        %s517 = smul.addr %s516, 2
        %s518 = scalar_lea.vmem [#allocation6], %s517
        // Predicated region
        $region73: #{tpu_custom_call.1} parent=67 // pred_check
          %p519 = pneg %p119
        $region74: #{tpu_custom_call.1} parent=67 // pred_check_branch
          %521 = sbr.rel (%p519) target = $region76
        $region75: #{tpu_custom_call.1} parent=67 // pred_region
          %522 = dma.done %s515, 32
        $region76: #{tpu_custom_call.1} parent=67 // pred_fallthru
          _
        // Predicated region
        $region77: #{tpu_custom_call.1} parent=67 // pred_check
          %p523 = pneg %p145
        $region78: #{tpu_custom_call.1} parent=67 // pred_check_branch
          %525 = sbr.rel (%p523) target = $region80
        $region79: #{tpu_custom_call.1} parent=67 // pred_region
          %526 = dma.done [#allocation7], 32
        $region80: #{tpu_custom_call.1} parent=67 // pred_fallthru
          _
        // Predicated region
        $region81: #{tpu_custom_call.1} parent=67 // pred_check
          %p527 = pneg %p197
        $region82: #{tpu_custom_call.1} parent=67 // pred_check_branch
          %529 = sbr.rel (%p527) target = $region84
        $region83: #{tpu_custom_call.1} parent=67 // pred_region
          %530 = dma.done [#allocation10], 32
        $region84: #{tpu_custom_call.1} parent=67 // pred_fallthru
          _
        // Predicated region
        $region85: #{tpu_custom_call.1} parent=67 // pred_check
          %p531 = pneg %p249
        $region86: #{tpu_custom_call.1} parent=67 // pred_check_branch
          %533 = sbr.rel (%p531) target = $region88
        $region87: #{tpu_custom_call.1} parent=67 // pred_region
          %534 = dma.done [#allocation10], 32
        $region88: #{tpu_custom_call.1} parent=67 // pred_fallthru
          _
        %p535 = scmp.lt.s32.totalorder %s38, 1
        %s536 = scalar_select %p535, %s38, 1
        %s537 = smul.addr %s536, 2
        %s538 = smul.addr %s537, 4
        %s539 = scalar_lea.vmem %s0, %s538
        %p540 = pneg %p67
        %p541 = pneg %p64
        %s542 = sand.u32 %s80, 1
        %s543 = scalar_lea.sflag [#allocation4], %s542
        %s544 = sand.u32 %s80, 1
        %s545 = smul.addr %s544, 2
        %s546 = scalar_lea.vmem [#allocation3], %s545
        %p547 = pneg %p93
        %p548 = pneg %p90
        %s549 = sand.u32 %s34, 1
        %s550 = scalar_lea.sflag [#allocation7], %s549
        %s551 = sand.u32 %s106, 1
        %s552 = smul.addr %s551, 2
        %s553 = scalar_lea.vmem [#allocation6], %s552
        %p554 = pneg %p119
        %p555 = pneg %p116
        %p556 = pneg %p145
        %p557 = pneg %p142
        %p558 = scmp.lt.s32.totalorder %s39, 0
        %s559 = scalar_select %p558, %s39, 0
        %s560 = smul.addr %s559, 4
        %s561 = scalar_lea.vmem %s4, %s560
        %p562 = pneg %p171
        %p563 = pneg %p168
        %p564 = pneg %p197
        %p565 = pneg %p194
        %p566 = scmp.lt.s32.totalorder %s39, 0
        %s567 = scalar_select %p566, %s39, 0
        %s568 = smul.addr %s567, 4
        %s569 = scalar_lea.vmem %s6, %s568
        %p570 = pneg %p223
        %p571 = pneg %p220
        %p572 = pneg %p249
        %p573 = pneg %p246
        %p574 = scmp.lt.s32.totalorder %s39, 0
        %s575 = scalar_select %p574, %s39, 0
        %s576 = smul.addr %s575, 4
        %s577 = scalar_lea.vmem %s8, %s576
        %p578 = pneg %p275
        %p579 = pneg %p272
        %p580 = pneg %p296
        %p581 = pneg %p293
        %p582 = pneg %p317
        %p583 = pneg %p314
        %p584 = pneg %p338
        %p585 = pneg %p335
        %p586 = pneg %p366
        %p587 = pneg %p363
        %s588 = sand.u32 %s353, 1
        %s589 = scalar_lea.sflag [#allocation5], %s588
        %s590 = sand.u32 %s353, 1
        %s591 = smul.addr %s590, 8
        %s592 = scalar_lea.vmem [#allocation12], %s591
        %p593 = scmp.lt.s32.totalorder %s38, 1
        %s594 = scalar_select %p593, %s38, 1
        %s595 = smul.addr %s594, 2
        %s596 = smul.addr %s595, 4
        %s597 = scalar_lea.vmem %s0, %s596
        %p598 = scmp.lt.s32.totalorder %s39, 0
        %s599 = scalar_select %p598, %s39, 0
        %s600 = smul.addr %s599, 4
        %s601 = scalar_lea.vmem %s4, %s600
        %p602 = scmp.lt.s32.totalorder %s39, 0
        %s603 = scalar_select %p602, %s39, 0
        %s604 = smul.addr %s603, 4
        %s605 = scalar_lea.vmem %s6, %s604
        %p606 = scmp.lt.s32.totalorder %s39, 0
        %s607 = scalar_select %p606, %s39, 0
        %s608 = smul.addr %s607, 4
        %s609 = scalar_lea.vmem %s8, %s608
        %v611 = vld [vmem:[%s597] sm:$0xff]
        %v613 = vcombine.high %v611, %v611
        %v615 = vpack.c.bf16 %v611, %v611
        %v616 = vpack.c.bf16 %v613, %v613
        %v617 = vld [vmem:[#allocation11] sm:$0x3]
        %v618 = vld [vmem:[%s609] sm:$0xf]
        %620 = vset.pattern.permute.xlu0 0
        %621 = vperm.xlu0 %620, %v618
        %v622 = vpop.permute.xlu0 %621
        %vm624 = vcmask 31744
        %v626 = vsel %vm624, %v617, 0
        %vm628 = vcmask 1041408
        %v630 = vsel %vm628, %v615, 0
        %v633 = vsel %vm628, %v616, 0
        %635 = vmatprep.subr.bf16.mxu0 %v633
        %636 = vmatpush1.bf16.msra.mxu0 %v630
        %637 = vmatprep.subr.bf16.mxu0 0
        %638 = vmatpush1.bf16.msra.mxu0 0
        %639 = vmatprep.subr.bf16.mxu0 0
        %640 = vmatpush1.bf16.msra.mxu0 0
        %641 = vmatprep.subr.bf16.mxu0 0
        %642 = vmatpush1.bf16.msra.mxu0 0
        %643 = vmatprep.subr.bf16.mxu0 0
        %644 = vmatpush1.bf16.msra.mxu0 0
        %645 = vmatprep.subr.bf16.mxu0 0
        %646 = vmatpush1.bf16.msra.mxu0 0
        %647 = vmatprep.subr.bf16.mxu0 0
        %648 = vmatpush1.bf16.msra.mxu0 0
        %649 = vmatprep.subr.bf16.mxu0 0
        %650 = vmatpush1.bf16.msra.mxu0 0
        %651 = vmatprep.subr.bf16.mxu0 0
        %652 = vmatpush1.bf16.msra.mxu0 0
        %653 = vmatprep.subr.bf16.mxu0 0
        %654 = vmatpush1.bf16.msra.mxu0 0
        %655 = vmatprep.subr.bf16.mxu0 0
        %656 = vmatpush1.bf16.msra.mxu0 0
        %657 = vmatprep.subr.bf16.mxu0 0
        %658 = vmatpush1.bf16.msra.mxu0 0
        %659 = vmatprep.subr.bf16.mxu0 0
        %660 = vmatpush1.bf16.msra.mxu0 0
        %661 = vmatprep.subr.bf16.mxu0 0
        %662 = vmatpush1.bf16.msra.mxu0 0
        %663 = vmatprep.subr.bf16.mxu0 0
        %664 = vmatpush1.bf16.msra.mxu0 0
        %665 = vmatprep.subr.bf16.mxu0 0
        %666 = vmatpush1.bf16.msra.mxu0 0
        %667 = vmatprep.mubr.bf16.mxu0 0
        %668 = vmatmul.mubr.bf16.gmra.mrb[0].mxu0 %v626
        %v669 = vpop.f32.mrb[0].mxu0
        %v670 = vadd.f32 %v622, %v669
        %v671 = vpop.f32.mrb[0].mxu0
        %v672 = vadd.f32 %v622, %v671
        %v673 = vpop.f32.mrb[0].mxu0
        %v674 = vpop.f32.mrb[0].mxu0
        %675 = vdwg.mxu0
        %v676 = vld [vmem:[#allocation8] sm:$0x3]
        %v677 = vld [vmem:[%s509] sm:$0x3]
        %v678 = vld [vmem:[%s601] sm:$0xf]
        %680 = vset.pattern.permute.xlu0 0
        %681 = vperm.xlu0 %680, %v678
        %v682 = vpop.permute.xlu0 %681
        %v685 = vsel %vm624, %v676, 0
        %v688 = vsel %vm628, %v677, 0
        %690 = vmatprep.subr.bf16.mxu0 0
        %691 = vmatpush1.bf16.msra.mxu0 %v688
        %692 = vmatprep.subr.bf16.mxu0 0
        %693 = vmatpush1.bf16.msra.mxu0 0
        %694 = vmatprep.subr.bf16.mxu0 0
        %695 = vmatpush1.bf16.msra.mxu0 0
        %696 = vmatprep.subr.bf16.mxu0 0
        %697 = vmatpush1.bf16.msra.mxu0 0
        %698 = vmatprep.subr.bf16.mxu0 0
        %699 = vmatpush1.bf16.msra.mxu0 0
        %700 = vmatprep.subr.bf16.mxu0 0
        %701 = vmatpush1.bf16.msra.mxu0 0
        %702 = vmatprep.subr.bf16.mxu0 0
        %703 = vmatpush1.bf16.msra.mxu0 0
        %704 = vmatprep.subr.bf16.mxu0 0
        %705 = vmatpush1.bf16.msra.mxu0 0
        %706 = vmatprep.subr.bf16.mxu0 0
        %707 = vmatpush1.bf16.msra.mxu0 0
        %708 = vmatprep.subr.bf16.mxu0 0
        %709 = vmatpush1.bf16.msra.mxu0 0
        %710 = vmatprep.subr.bf16.mxu0 0
        %711 = vmatpush1.bf16.msra.mxu0 0
        %712 = vmatprep.subr.bf16.mxu0 0
        %713 = vmatpush1.bf16.msra.mxu0 0
        %714 = vmatprep.subr.bf16.mxu0 0
        %715 = vmatpush1.bf16.msra.mxu0 0
        %716 = vmatprep.subr.bf16.mxu0 0
        %717 = vmatpush1.bf16.msra.mxu0 0
        %718 = vmatprep.subr.bf16.mxu0 0
        %719 = vmatpush1.bf16.msra.mxu0 0
        %720 = vmatprep.subr.bf16.mxu0 0
        %721 = vmatpush1.bf16.msra.mxu0 0
        %722 = vmatprep.mubr.bf16.mxu0 0
        %723 = vmatmul.mubr.bf16.gmra.mrb[0].mxu0 %v685
        %v724 = vpop.f32.mrb[0].mxu0
        %v725 = vadd.f32 %v682, %v724
        %v726 = vpop.f32.mrb[0].mxu0
        %v727 = vpop.f32.mrb[0].mxu0
        %v728 = vpop.f32.mrb[0].mxu0
        %729 = vdwg.mxu0
        %v730 = vld [vmem:[#allocation9] sm:$0x3]
        %v731 = vld [vmem:[%s518] sm:$0x3]
        %v732 = vld [vmem:[%s605] sm:$0xf]
        %734 = vset.pattern.permute.xlu0 0
        %735 = vperm.xlu0 %734, %v732
        %v736 = vpop.permute.xlu0 %735
        %v739 = vsel %vm624, %v730, 0
        %v742 = vsel %vm628, %v731, 0
        %744 = vmatprep.subr.bf16.mxu0 0
        %745 = vmatpush1.bf16.msra.mxu0 %v742
        %746 = vmatprep.subr.bf16.mxu0 0
        %747 = vmatpush1.bf16.msra.mxu0 0
        %748 = vmatprep.subr.bf16.mxu0 0
        %749 = vmatpush1.bf16.msra.mxu0 0
        %750 = vmatprep.subr.bf16.mxu0 0
        %751 = vmatpush1.bf16.msra.mxu0 0
        %752 = vmatprep.subr.bf16.mxu0 0
        %753 = vmatpush1.bf16.msra.mxu0 0
        %754 = vmatprep.subr.bf16.mxu0 0
        %755 = vmatpush1.bf16.msra.mxu0 0
        %756 = vmatprep.subr.bf16.mxu0 0
        %757 = vmatpush1.bf16.msra.mxu0 0
        %758 = vmatprep.subr.bf16.mxu0 0
        %759 = vmatpush1.bf16.msra.mxu0 0
        %760 = vmatprep.subr.bf16.mxu0 0
        %761 = vmatpush1.bf16.msra.mxu0 0
        %762 = vmatprep.subr.bf16.mxu0 0
        %763 = vmatpush1.bf16.msra.mxu0 0
        %764 = vmatprep.subr.bf16.mxu0 0
        %765 = vmatpush1.bf16.msra.mxu0 0
        %766 = vmatprep.subr.bf16.mxu0 0
        %767 = vmatpush1.bf16.msra.mxu0 0
        %768 = vmatprep.subr.bf16.mxu0 0
        %769 = vmatpush1.bf16.msra.mxu0 0
        %770 = vmatprep.subr.bf16.mxu0 0
        %771 = vmatpush1.bf16.msra.mxu0 0
        %772 = vmatprep.subr.bf16.mxu0 0
        %773 = vmatpush1.bf16.msra.mxu0 0
        %774 = vmatprep.subr.bf16.mxu0 0
        %775 = vmatpush1.bf16.msra.mxu0 0
        %776 = vmatprep.mubr.bf16.mxu0 0
        %777 = vmatmul.mubr.bf16.gmra.mrb[0].mxu0 %v739
        %v778 = vpop.f32.mrb[0].mxu0
        %v779 = vadd.f32 %v736, %v778
        %v780 = vpop.f32.mrb[0].mxu0
        %v781 = vpop.f32.mrb[0].mxu0
        %v782 = vpop.f32.mrb[0].mxu0
        %783 = vdwg.mxu0
        %v784 = vpack.c.bf16 %v725, %v725
        %v785 = vpack.c.bf16 %v779, %v779
        %v786 = vunpack.c.l.bf16 %v784
        %v787 = vunpack.c.l.bf16 %v785
        %vm788 = vcmask 125952
        %v789 = vsel %vm788, %v786, -inf
        %790 = vmax.xlane.f32.xlu0 %v789
        %v791 = vpop.xlane.xlu0 %790
        %v792 = vsel %vm788, %v786, inf
        %793 = vmin.xlane.f32.xlu0 %v792
        %v794 = vpop.xlane.xlu0 %793
        %v795 = vsel %vm788, %v787, -inf
        %796 = vmax.xlane.f32.xlu0 %v795
        %v797 = vpop.xlane.xlu0 %796
        %v798 = vsel %vm788, %v787, inf
        %799 = vmin.xlane.f32.xlu0 %v798
        %v800 = vpop.xlane.xlu0 %799
        %v801 = vmul.f32 %v791, %v797
        %v802 = vmul.f32 %v791, %v800
        %v803 = vmax.f32 %v801, %v802
        %v804 = vmul.f32 %v794, %v797
        %v805 = vmul.f32 %v794, %v800
        %v806 = vmax.f32 %v804, %v805
        %v807 = vmax.f32 %v803, %v806
        %v808 = vld [vmem:[%s9] sm:$0xff]
        %v809 = vld [vmem:[%s9 + $0x8] sm:$0xff]
        %v812 = vunpack.c.l.b16 %v808
        %v813 = vunpack.c.h.b16 %v808
        %v814 = vunpack.c.l.b16 %v809
        %v815 = vunpack.c.h.b16 %v809
        %v816 = vpack.c.b16 %v814, %v812
        %v817 = vpack.c.b16 %v815, %v813
        %vm820 = vcmask 130048
        %v822 = vsel %vm820, %v784, 0
        %824 = vmatprep.subr.bf16.mxu0 %v817
        %825 = vmatpush1.bf16.msra.mxu0 %v816
        %826 = vmatprep.subr.bf16.mxu0 0
        %827 = vmatpush1.bf16.msra.mxu0 0
        %828 = vmatprep.subr.bf16.mxu0 0
        %829 = vmatpush1.bf16.msra.mxu0 0
        %830 = vmatprep.subr.bf16.mxu0 0
        %831 = vmatpush1.bf16.msra.mxu0 0
        %832 = vmatprep.subr.bf16.mxu0 0
        %833 = vmatpush1.bf16.msra.mxu0 0
        %834 = vmatprep.subr.bf16.mxu0 0
        %835 = vmatpush1.bf16.msra.mxu0 0
        %836 = vmatprep.subr.bf16.mxu0 0
        %837 = vmatpush1.bf16.msra.mxu0 0
        %838 = vmatprep.subr.bf16.mxu0 0
        %839 = vmatpush1.bf16.msra.mxu0 0
        %840 = vmatprep.subr.bf16.mxu0 0
        %841 = vmatpush1.bf16.msra.mxu0 0
        %842 = vmatprep.subr.bf16.mxu0 0
        %843 = vmatpush1.bf16.msra.mxu0 0
        %844 = vmatprep.subr.bf16.mxu0 0
        %845 = vmatpush1.bf16.msra.mxu0 0
        %846 = vmatprep.subr.bf16.mxu0 0
        %847 = vmatpush1.bf16.msra.mxu0 0
        %848 = vmatprep.subr.bf16.mxu0 0
        %849 = vmatpush1.bf16.msra.mxu0 0
        %850 = vmatprep.subr.bf16.mxu0 0
        %851 = vmatpush1.bf16.msra.mxu0 0
        %852 = vmatprep.subr.bf16.mxu0 0
        %853 = vmatpush1.bf16.msra.mxu0 0
        %854 = vmatprep.subr.bf16.mxu0 0
        %855 = vmatpush1.bf16.msra.mxu0 0
        %856 = vmatprep.mubr.bf16.mxu0 0
        %857 = vmatmul.mubr.bf16.gmra.mrb[0].mxu0 %v822
        %v858 = vpop.f32.mrb[0].mxu0
        %v859 = vadd.f32 0.0, %v858
        %v860 = vpop.f32.mrb[0].mxu0
        %v861 = vadd.f32 0.0, %v860
        %v862 = vpop.f32.mrb[0].mxu0
        %v863 = vpop.f32.mrb[0].mxu0
        %864 = vdwg.mxu0
        %v865 = vld [vmem:[%s10] sm:$0xff]
        %v866 = vld [vmem:[%s10 + $0x8] sm:$0xff]
        %v869 = vunpack.c.l.b16 %v865
        %v870 = vunpack.c.h.b16 %v865
        %v871 = vunpack.c.l.b16 %v866
        %v872 = vunpack.c.h.b16 %v866
        %v873 = vpack.c.b16 %v871, %v869
        %v874 = vpack.c.b16 %v872, %v870
        %v878 = vsel %vm820, %v785, 0
        %880 = vmatprep.subr.bf16.mxu0 %v874
        %881 = vmatpush1.bf16.msra.mxu0 %v873
        %882 = vmatprep.subr.bf16.mxu0 0
        %883 = vmatpush1.bf16.msra.mxu0 0
        %884 = vmatprep.subr.bf16.mxu0 0
        %885 = vmatpush1.bf16.msra.mxu0 0
        %886 = vmatprep.subr.bf16.mxu0 0
        %887 = vmatpush1.bf16.msra.mxu0 0
        %888 = vmatprep.subr.bf16.mxu0 0
        %889 = vmatpush1.bf16.msra.mxu0 0
        %890 = vmatprep.subr.bf16.mxu0 0
        %891 = vmatpush1.bf16.msra.mxu0 0
        %892 = vmatprep.subr.bf16.mxu0 0
        %893 = vmatpush1.bf16.msra.mxu0 0
        %894 = vmatprep.subr.bf16.mxu0 0
        %895 = vmatpush1.bf16.msra.mxu0 0
        %896 = vmatprep.subr.bf16.mxu0 0
        %897 = vmatpush1.bf16.msra.mxu0 0
        %898 = vmatprep.subr.bf16.mxu0 0
        %899 = vmatpush1.bf16.msra.mxu0 0
        %900 = vmatprep.subr.bf16.mxu0 0
        %901 = vmatpush1.bf16.msra.mxu0 0
        %902 = vmatprep.subr.bf16.mxu0 0
        %903 = vmatpush1.bf16.msra.mxu0 0
        %904 = vmatprep.subr.bf16.mxu0 0
        %905 = vmatpush1.bf16.msra.mxu0 0
        %906 = vmatprep.subr.bf16.mxu0 0
        %907 = vmatpush1.bf16.msra.mxu0 0
        %908 = vmatprep.subr.bf16.mxu0 0
        %909 = vmatpush1.bf16.msra.mxu0 0
        %910 = vmatprep.subr.bf16.mxu0 0
        %911 = vmatpush1.bf16.msra.mxu0 0
        %912 = vmatprep.mubr.bf16.mxu0 0
        %913 = vmatmul.mubr.bf16.gmra.mrb[0].mxu0 %v878
        %v914 = vpop.f32.mrb[0].mxu0
        %v915 = vadd.f32 0.0, %v914
        %v916 = vpop.f32.mrb[0].mxu0
        %v917 = vadd.f32 0.0, %v916
        %v918 = vpop.f32.mrb[0].mxu0
        %v919 = vpop.f32.mrb[0].mxu0
        %920 = vdwg.mxu0
        %v921 = vmul.f32 %v859, %v915
        %v922 = vmul.f32 %v861, %v917
        %v923 = vsub.f32 %v921, %v807
        %v924 = vsub.f32 %v922, %v807
        %v925 = vmul.f32 %v923, 1.442695
        %v926 = vpow.pop %v925
        %v927 = vmul.f32 %v924, 1.442695
        %v928 = vpow.pop %v927
        %s929 = sld [smem:[#allocation2]]
        %vm930 = vcmask 1043456
        %v931 = vsel %vm930, %v926, 0.0
        %v932 = vsel %vm930, %v928, 0.0
        %v933 = vadd.f32 %v931, %v932
        %934 = vadd.xlane.f32.xlu0 %v933
        %v935 = vpop.xlane.xlu0 %934
        %v936 = vrcp.pop %v935
        %v937 = vstv %s929
        %v938 = vmul.f32 %v937, %v936
        %v939 = vmul.f32 %v670, %v926
        %v940 = vmul.f32 %v672, %v928
        %v941 = vmul.f32 %v939, %v938
        %v942 = vmul.f32 %v940, %v938
        %v943 = vadd.f32 %v941, %v611
        %v944 = vadd.f32 %v942, %v613
        %v947 = vcombine.low %v943, %v944
        %949 = vst [vmem:[%s592] sm:$0xff] %v947
        %s950 = sand.u32 %s353, 1
        %s951 = scalar_lea.sflag [#allocation5], %s950
        %s952 = sand.u32 %s353, 1
        %s953 = smul.addr %s952, 8
        %s954 = scalar_lea.vmem [#allocation12], %s953
        // Predicated region
        $region89: #{tpu_custom_call.1} parent=67 // pred_check
          %p955 = pneg %p363
        $region90: #{tpu_custom_call.1} parent=67 // pred_check_branch
          %957 = sbr.rel (%p955) target = $region92
        $region91: #{tpu_custom_call.1} parent=67 // pred_region
          %s959 = ssub.s32 128, 128
          %960 = vsyncadd %s951, %s959
          %s961 = smul.addr %s39, 2
          %s962 = smul.addr %s38, 2
          %s963 = sadd.s32 %s961, %s962
          %s964 = smul.addr %s963, 64
          %s965 = scalar_lea.hbm %s12, %s964
          %s967 = sshll.u32 %s954, 4
          %s968 = int_to_ptr.vmem [resolvable:$true] %s967
          %970 = dma.vmem_to_hbm [thread:$0]  %s968, 128, %s965, %s951
        $region92: #{tpu_custom_call.1} parent=67 // pred_fallthru
          _
      $region68: #{tpu_custom_call.1} parent=5 // pred_fallthru
        _
      %p971 = scmp.le.s32.totalorder 2, %s29
      // Predicated region
      $region93: #{tpu_custom_call.1} parent=5 // pred_check
        %p972 = pneg %p971
      $region94: #{tpu_custom_call.1} parent=5 // pred_check_branch
        %974 = sbr.rel (%p972) target = $region96
      $region95: #{tpu_custom_call.1} parent=5 // pred_region
        %s975 = ssub.s32 %s29, 2
        // Predicated region
        $region97: #{tpu_custom_call.1} parent=95 // pred_check
          %p976 = pneg %p369
        $region98: #{tpu_custom_call.1} parent=95 // pred_check_branch
          %978 = sbr.rel (%p976) target = $region100
        $region99: #{tpu_custom_call.1} parent=95 // pred_region
          %s979 = sand.u32 %s354, 1
          %s980 = scalar_lea.sflag [#allocation5], %s979
          %s981 = sand.u32 %s354, 1
          %s982 = smul.addr %s981, 8
          %s983 = scalar_lea.vmem [#allocation12], %s982
          %984 = dma.done %s980, 128
        $region100: #{tpu_custom_call.1} parent=95 // pred_fallthru
          _
      $region96: #{tpu_custom_call.1} parent=5 // pred_fallthru
        _
    $region6: #{tpu_custom_call.1} parent=1 // loop_footer
      %s33 = sadd.s32 1, %s29
    $region7: #{tpu_custom_call.1} parent=1 // loop_footer_branch
      %28 = sbr.rel target = $region3
    $region8: #{tpu_custom_call.1} parent=1 // loop_exit
      _
    %985 = vsyncpa [#allocation4], 1
    %s986 = scalar_lea.sflag [#allocation4], 1
    %987 = vsyncpa %s986, 1
    %988 = vsyncpa [#allocation7], 1
    %s989 = scalar_lea.sflag [#allocation7], 1
    %990 = vsyncpa %s989, 1
    %991 = vsyncpa [#allocation10], 1
    %992 = vsyncpa [#allocation5], 1
    %s993 = scalar_lea.sflag [#allocation5], 1
    %994 = vsyncpa %s993, 1

</llo_original>
